<compile_context>
chip_gen: v5e
topology: v5e:2x2
jax: 0.10.0
libtpu: 0.0.40
codegen_flags: <defaults>
</compile_context>

<pallas_src>
import functools
import math

import jax
import jax.numpy as jnp
import numpy as np
from jax.experimental import pallas as pl
from jax.experimental.pallas import tpu as pltpu


def _ceil_div(a, b):
    return -(-a // b)


def _round_up(a, m):
    return _ceil_div(a, m) * m


# ---------------------------------------------------------------------------
# Fused kernel: conv1 (one K=3F+1 matmul) -> VMEM staging -> conv2 (W2 matmuls,
# each K=9C) -> Linear (one matmul).  One grid step = `tt` final time rows.
# ---------------------------------------------------------------------------
def _fused_subsample_kernel(a_ref, w1_ref, w2_ref, b2_ref, wl_ref, bl_ref,
                            o_ref, s1_ref, *, tt, w2_out, channels):
    C = channels
    # ---- conv1: (2tt+2, K1) @ (K1, (W1+2)*C).  Bias + every zero-padding
    #      validity condition are folded into the ones column of `a` / the
    #      matching row of the expanded weight -> no masks, no iota.
    h1 = jnp.dot(a_ref[0], w1_ref[...], preferred_element_type=jnp.float32)
    s1_ref[...] = jnp.maximum(h1, 0.0).astype(s1_ref.dtype)
    # s1 rows: [0, tt]     -> odd  conv1 rows 2*t0-1, 2*t0+1, ... (taps ki=0,2)
    #          [tt+1, 2tt] -> even conv1 rows 2*t0,   2*t0+2, ... (tap  ki=1)
    # s1 lanes: (padded conv1 column) x channel, contiguous C-wide groups.
    row0 = (0, tt + 1, 1)  # first scratch row per conv2 row-tap ki

    # ---- conv2 + ReLU: one K = 9*C matmul per output frequency.
    h2_parts = []
    for fq in range(w2_out):
        lhs = jnp.concatenate(
            [s1_ref[row0[ki]:row0[ki] + tt,
                    (2 * fq + kj) * C:(2 * fq + kj + 1) * C]
             for ki in range(3) for kj in range(3)],
            axis=-1)                                               # (tt, 9C) bf16
        g = jnp.dot(lhs, w2_ref[...], preferred_element_type=jnp.float32)
        h2_parts.append(jnp.maximum(g + b2_ref[...], 0.0))         # (tt, C) f32
    h2 = jnp.concatenate(h2_parts, axis=-1)                        # (tt, W2*C) f32

    # ---- Linear: channel-major flatten folded into the weight layout.
    o_ref[...] = (jnp.dot(h2.astype(jnp.bfloat16), wl_ref[...],
                          preferred_element_type=jnp.float32)
                  + bl_ref[...]).astype(o_ref.dtype)


# ---------------------------------------------------------------------------
# Wrapper: one-time layout plumbing on the (small) raw input / weights + the
# pallas_call.
# ---------------------------------------------------------------------------
def striding_subsampling_forward(x, params, *, tile_t=64):
    """x: (feat_in, T) f32.  params: {'conv': [(w, b), ...], 'out_w', 'out_b'}."""
    feat_in, T = x.shape
    conv = params["conv"]
    if len(conv) != 2:
        # TODO(synk): only the subsampling_factor=4 (two-conv) path is fused in Pallas.
        raise NotImplementedError("fused Pallas path implemented for subsampling_factor=4")

    F = feat_in
    C = conv[0][0].shape[0]
    Fo = params["out_w"].shape[0]
    H1, W1 = (T + 1) // 2, (F + 1) // 2
    H2, W2 = (H1 + 1) // 2, (W1 + 1) // 2
    assert params["out_w"].shape[1] == C * W2

    K1 = _round_up(3 * F + 1, 128)      # conv1 K: 3 raw rows + ones column, lane aligned
    N1 = (W1 + 2) * C                   # conv1 output lanes: padded cols x channels
    Fop = _round_up(Fo, 128)            # lane-dense output stores

    # ---- time tiling: big tiles amortize per-step overhead; keep >= 2 grid
    #      steps when there is enough work so v7x's two TensorCores both run.
    G0 = max(1, _ceil_div(H2, tile_t))
    if G0 == 1 and H2 > 16:
        G0 = 2
    tt = _round_up(_ceil_div(H2, G0), 8)
    G = _ceil_div(H2, tt)

    # ---- conv1 operand: row-im2col of raw rows (+ ones column), parity-grouped
    #      rows, per-tile windows built with reshapes / strided slices (no gather).
    xt = x.T.astype(jnp.float32)                                   # (T, F)
    xpad = jnp.pad(xt, ((1, 2 * H1 - T), (0, 0)))                  # raw rows -1 .. 2*H1-1
    a_valid = jnp.concatenate(
        [xpad[0::2][:H1], xpad[1::2][:H1], xpad[2::2][:H1],
         jnp.ones((H1, 1), jnp.float32)], axis=1)                  # (H1, 3F+1)
    R = 2 * G * tt + 1
    a_raw = jnp.zeros((R, K1), jnp.float32)
    a_raw = a_raw.at[1:1 + H1, :3 * F + 1].set(a_valid)            # conv1 row r at index r+1
    a_odd = a_raw[0::2]                                            # conv1 rows -1,1,3,.. (G*tt+1, K1)
    a_even = a_raw[1::2]                                           # conv1 rows  0,2,4,.. (G*tt,   K1)
    a_win = jnp.concatenate(
        [jnp.concatenate([a_odd[:-1].reshape(G, tt, K1),
                          a_odd[tt::tt][:, None, :]], axis=1),     # (G, tt+1, K1)
         a_even.reshape(G, tt, K1),                                # (G, tt,   K1)
         jnp.zeros((G, 1, K1), jnp.float32)],
        axis=1).astype(jnp.bfloat16)                               # (G, 2tt+2, K1)

    # ---- conv1 expanded weight: folds the 3x3 taps, the stride-2 column map,
    #      the bias and the padding validity into one (K1, N1) matrix.
    w1c, b1 = conv[0]
    sel = np.zeros((3 * F, 3, 3, W1 + 2), np.float32)
    valid = np.zeros((W1 + 2,), np.float32)
    for col in range(W1 + 2):
        w1col = col - 1
        if 0 <= w1col < W1:
            valid[col] = 1.0
            for ki in range(3):
                for kj in range(3):
                    f = 2 * w1col - 1 + kj
                    if 0 <= f < F:
                        sel[ki * F + f, ki, kj, col] = 1.0
    w1e_core = jnp.einsum("kabn,cab->knc", jnp.asarray(sel), w1c[:, 0])   # (3F, W1+2, C)
    w1e = jnp.zeros((K1, N1), jnp.float32)
    w1e = w1e.at[:3 * F].set(w1e_core.reshape(3 * F, N1))
    w1e = w1e.at[3 * F].set((jnp.asarray(valid)[:, None] * b1[None, :]).reshape(N1))
    w1e = w1e.astype(jnp.bfloat16)

    # ---- conv2 / Linear weights (bf16 for the MXU; biases stay f32)
    w2c, b2 = conv[1]
    w2m = jnp.transpose(w2c, (2, 3, 1, 0)).reshape(9 * C, C).astype(jnp.bfloat16)  # K order (ki,kj,ci)
    b2r = b2.reshape(1, C).astype(jnp.float32)
    wl = jnp.transpose(params["out_w"].reshape(Fo, C, W2), (2, 1, 0)).reshape(W2 * C, Fo)
    wl = jnp.pad(wl, ((0, 0), (0, Fop - Fo))).astype(jnp.bfloat16)       # rows ordered (w2, c)
    bl = jnp.pad(params["out_b"], (0, Fop - Fo)).reshape(1, Fop).astype(jnp.float32)

    kernel = functools.partial(_fused_subsample_kernel, tt=tt, w2_out=W2, channels=C)
    # TODO(synk): at production sizes (C=768) request single buffering
    # (pipeline_mode=pl.Buffered(1)) on the three resident weight specs so they
    # are not double-buffered inside v7x's 64 MiB VMEM.
    y = pl.pallas_call(
        kernel,
        out_shape=jax.ShapeDtypeStruct((G * tt, Fop), jnp.float32),
        grid=(G,),
        in_specs=[
            pl.BlockSpec((1, 2 * tt + 2, K1), lambda i: (i, 0, 0)),   # conv1 row-im2col tile
            pl.BlockSpec((K1, N1), lambda i: (0, 0)),                 # conv1 expanded W (resident)
            pl.BlockSpec((9 * C, C), lambda i: (0, 0)),               # conv2 W, K=9C    (resident)
            pl.BlockSpec((1, C), lambda i: (0, 0)),                   # conv2 bias (f32)
            pl.BlockSpec((W2 * C, Fop), lambda i: (0, 0)),            # Linear W         (resident)
            pl.BlockSpec((1, Fop), lambda i: (0, 0)),                 # Linear bias (f32)
        ],
        out_specs=pl.BlockSpec((tt, Fop), lambda i: (i, 0)),
        scratch_shapes=[pltpu.VMEM((2 * tt + 2, N1), jnp.bfloat16)],
        compiler_params=pltpu.CompilerParams(
            dimension_semantics=("parallel",),
        ),
    )(a_win, w1e, w2m, b2r, wl, bl)
    return y[:H2, :Fo][None]                                          # (1, t_out, feat_out)


# ---------------------------------------------------------------------------
# Pure-JAX reference (lax.conv) used only for verification.
# ---------------------------------------------------------------------------
def reference_forward(x, params):
    h = x.T[None, None, :, :]                                        # NCHW (1, 1, T, feat_in)
    for (w, b) in params["conv"]:
        h = jax.lax.conv_general_dilated(
            h, w, window_strides=(2, 2), padding=((1, 1), (1, 1)),
            dimension_numbers=("NCHW", "OIHW", "NCHW"))
        h = jnp.maximum(h + b[None, :, None, None], 0.0)
    t = h.shape[2]
    flat = jnp.transpose(h, (0, 2, 1, 3)).reshape(1, t, -1)
    return flat @ params["out_w"].T + params["out_b"]


def calc_output_length(length, sampling_num, kernel_size=3, stride=2, padding=1):
    add_pad = 2 * padding - kernel_size
    for _ in range(sampling_num):
        length = int((length + add_pad) / stride) + 1
        length = math.floor(length)
    return int(length)


if __name__ == "__main__":
    # Small, module-consistent shapes.
    subsampling_factor = 4          # -> 2 conv layers (module default)
    feat_in = 16
    feat_out = 32
    conv_channels = 16
    T = 128

    sampling_num = int(math.log(subsampling_factor, 2))
    out_length = calc_output_length(feat_in, sampling_num)    # = 4
    t_out = calc_output_length(T, sampling_num)               # = 32

    key = jax.random.PRNGKey(0)
    keys = jax.random.split(key, 2 * sampling_num + 3)

    conv_params = []
    in_ch = 1
    k_idx = 0
    for _ in range(sampling_num):
        w = 0.1 * jax.random.normal(keys[k_idx], (conv_channels, in_ch, 3, 3), jnp.float32)
        k_idx += 1
        b = 0.1 * jax.random.normal(keys[k_idx], (conv_channels,), jnp.float32)
        k_idx += 1
        conv_params.append((w, b))
        in_ch = conv_channels

    out_w = 0.05 * jax.random.normal(
        keys[k_idx], (feat_out, conv_channels * out_length), jnp.float32)
    k_idx += 1
    out_b = 0.05 * jax.random.normal(keys[k_idx], (feat_out,), jnp.float32)
    k_idx += 1
    x = jax.random.normal(keys[k_idx], (feat_in, T), jnp.float32)

    params = {"conv": conv_params, "out_w": out_w, "out_b": out_b}

    fwd = jax.jit(functools.partial(striding_subsampling_forward, tile_t=64))
    y = jax.block_until_ready(fwd(x, params))
    assert y.shape == (1, t_out, feat_out), y.shape

    y_ref = jax.block_until_ready(reference_forward(x, params))
    max_err = float(jnp.max(jnp.abs(y - y_ref)))
    assert jnp.allclose(y, y_ref, rtol=2e-2, atol=2e-2), max_err

    print("KERNEL_OK")
</pallas_src>

<mosaic_0001>
module attributes {stable_mosaic.version = 11 : i64} {
  func.func @_fused_subsample_kernel(%arg0: i32, %arg1: memref<1x34x128xbf16, #tpu.memory_space<vmem>>, %arg2: memref<128x160xbf16, #tpu.memory_space<vmem>>, %arg3: memref<144x16xbf16, #tpu.memory_space<vmem>>, %arg4: memref<1x16xf32, #tpu.memory_space<vmem>>, %arg5: memref<64x128xbf16, #tpu.memory_space<vmem>>, %arg6: memref<1x128xf32, #tpu.memory_space<vmem>>, %arg7: memref<16x128xf32, #tpu.memory_space<vmem>>, %arg8: memref<34x160xbf16, #tpu.memory_space<vmem>>) attributes {dimension_semantics = [#tpu.dimension_semantics<parallel>], iteration_bounds = array<i64: 2>, scalar_prefetch = 0 : i64, scratch_operands = 1 : i64, tpu.core_type = #tpu.core_type<tc>, window_params = [{transform_indices = @transform_0, window_bounds = array<i64: 1, 34, 128>}, {pipeline_mode = #tpu.pipeline_mode<synchronous>, transform_indices = @transform_1, window_bounds = array<i64: 128, 160>}, {pipeline_mode = #tpu.pipeline_mode<synchronous>, transform_indices = @transform_2, window_bounds = array<i64: 144, 16>}, {pipeline_mode = #tpu.pipeline_mode<synchronous>, transform_indices = @transform_3, window_bounds = array<i64: 1, 16>}, {pipeline_mode = #tpu.pipeline_mode<synchronous>, transform_indices = @transform_4, window_bounds = array<i64: 64, 128>}, {pipeline_mode = #tpu.pipeline_mode<synchronous>, transform_indices = @transform_5, window_bounds = array<i64: 1, 128>}, {transform_indices = @transform_6, window_bounds = array<i64: 16, 128>}]} {
    %c0 = arith.constant 0 : index
    %c0_0 = arith.constant 0 : index
    %c0_1 = arith.constant 0 : index
    %0 = vector.load %arg1[%c0, %c0_0, %c0_1] : memref<1x34x128xbf16, #tpu.memory_space<vmem>>, vector<1x34x128xbf16>
    %1 = vector.shape_cast %0 : vector<1x34x128xbf16> to vector<34x128xbf16>
    %c0_2 = arith.constant 0 : index
    %c0_3 = arith.constant 0 : index
    %2 = vector.load %arg2[%c0_2, %c0_3] : memref<128x160xbf16, #tpu.memory_space<vmem>>, vector<128x160xbf16>
    %cst = arith.constant dense<0.000000e+00> : vector<34x160xf32>
    %3 = tpu.matmul %1, %2, %cst {dimension_numbers = #tpu.dot_dimension_numbers<[1], [0], [0], [1], [0, 0, 1, 1], [], []>} : vector<34x128xbf16>, vector<128x160xbf16>, vector<34x160xf32> -> vector<34x160xf32>
    %cst_4 = arith.constant 0.000000e+00 : f32
    %4 = vector.broadcast %cst_4 : f32 to vector<34x160xf32>
    %5 = arith.maximumf %3, %4 : vector<34x160xf32>
    %6 = arith.truncf %5 : vector<34x160xf32> to vector<34x160xbf16>
    %c0_5 = arith.constant 0 : index
    %c0_6 = arith.constant 0 : index
    %7 = vector.load %arg8[%c0_5, %c0_6] : memref<34x160xbf16, #tpu.memory_space<vmem>>, vector<34x160xbf16>
    tpu.vector_store %arg8[%c0_5, %c0_6], %6 {strides = array<i32>} : memref<34x160xbf16, #tpu.memory_space<vmem>>, vector<34x160xbf16>,
    %c0_7 = arith.constant 0 : index
    %c0_8 = arith.constant 0 : index
    %8 = vector.load %arg8[%c0_7, %c0_8] : memref<34x160xbf16, #tpu.memory_space<vmem>>, vector<16x16xbf16>
    %c0_9 = arith.constant 0 : index
    %c16 = arith.constant 16 : index
    %9 = vector.load %arg8[%c0_9, %c16] : memref<34x160xbf16, #tpu.memory_space<vmem>>, vector<16x16xbf16>
    %c0_10 = arith.constant 0 : index
    %c32 = arith.constant 32 : index
    %10 = vector.load %arg8[%c0_10, %c32] : memref<34x160xbf16, #tpu.memory_space<vmem>>, vector<16x16xbf16>
    %c17 = arith.constant 17 : index
    %c0_11 = arith.constant 0 : index
    %11 = vector.load %arg8[%c17, %c0_11] : memref<34x160xbf16, #tpu.memory_space<vmem>>, vector<16x16xbf16>
    %c17_12 = arith.constant 17 : index
    %c16_13 = arith.constant 16 : index
    %12 = vector.load %arg8[%c17_12, %c16_13] : memref<34x160xbf16, #tpu.memory_space<vmem>>, vector<16x16xbf16>
    %c17_14 = arith.constant 17 : index
    %c32_15 = arith.constant 32 : index
    %13 = vector.load %arg8[%c17_14, %c32_15] : memref<34x160xbf16, #tpu.memory_space<vmem>>, vector<16x16xbf16>
    %c1 = arith.constant 1 : index
    %c0_16 = arith.constant 0 : index
    %14 = vector.load %arg8[%c1, %c0_16] : memref<34x160xbf16, #tpu.memory_space<vmem>>, vector<16x16xbf16>
    %c1_17 = arith.constant 1 : index
    %c16_18 = arith.constant 16 : index
    %15 = vector.load %arg8[%c1_17, %c16_18] : memref<34x160xbf16, #tpu.memory_space<vmem>>, vector<16x16xbf16>
    %c1_19 = arith.constant 1 : index
    %c32_20 = arith.constant 32 : index
    %16 = vector.load %arg8[%c1_19, %c32_20] : memref<34x160xbf16, #tpu.memory_space<vmem>>, vector<16x16xbf16>
    %17 = tpu.concatenate %8, %9, %10, %11, %12, %13, %14, %15, %16 in 1 : vector<16x16xbf16>, vector<16x16xbf16>, vector<16x16xbf16>, vector<16x16xbf16>, vector<16x16xbf16>, vector<16x16xbf16>, vector<16x16xbf16>, vector<16x16xbf16>, vector<16x16xbf16> -> vector<16x144xbf16>
    %c0_21 = arith.constant 0 : index
    %c0_22 = arith.constant 0 : index
    %18 = vector.load %arg3[%c0_21, %c0_22] : memref<144x16xbf16, #tpu.memory_space<vmem>>, vector<144x16xbf16>
    %cst_23 = arith.constant dense<0.000000e+00> : vector<16x16xf32>
    %19 = tpu.matmul %17, %18, %cst_23 {dimension_numbers = #tpu.dot_dimension_numbers<[1], [0], [0], [1], [0, 0, 1, 1], [], []>} : vector<16x144xbf16>, vector<144x16xbf16>, vector<16x16xf32> -> vector<16x16xf32>
    %c0_24 = arith.constant 0 : index
    %c0_25 = arith.constant 0 : index
    %20 = vector.load %arg4[%c0_24, %c0_25] : memref<1x16xf32, #tpu.memory_space<vmem>>, vector<1x16xf32>
    %21 = vector.broadcast %20 : vector<1x16xf32> to vector<16x16xf32>
    %22 = arith.addf %19, %21 : vector<16x16xf32>
    %cst_26 = arith.constant 0.000000e+00 : f32
    %23 = vector.broadcast %cst_26 : f32 to vector<16x16xf32>
    %24 = arith.maximumf %22, %23 : vector<16x16xf32>
    %c0_27 = arith.constant 0 : index
    %c32_28 = arith.constant 32 : index
    %25 = vector.load %arg8[%c0_27, %c32_28] : memref<34x160xbf16, #tpu.memory_space<vmem>>, vector<16x16xbf16>
    %c0_29 = arith.constant 0 : index
    %c48 = arith.constant 48 : index
    %26 = vector.load %arg8[%c0_29, %c48] : memref<34x160xbf16, #tpu.memory_space<vmem>>, vector<16x16xbf16>
    %c0_30 = arith.constant 0 : index
    %c64 = arith.constant 64 : index
    %27 = vector.load %arg8[%c0_30, %c64] : memref<34x160xbf16, #tpu.memory_space<vmem>>, vector<16x16xbf16>
    %c17_31 = arith.constant 17 : index
    %c32_32 = arith.constant 32 : index
    %28 = vector.load %arg8[%c17_31, %c32_32] : memref<34x160xbf16, #tpu.memory_space<vmem>>, vector<16x16xbf16>
    %c17_33 = arith.constant 17 : index
    %c48_34 = arith.constant 48 : index
    %29 = vector.load %arg8[%c17_33, %c48_34] : memref<34x160xbf16, #tpu.memory_space<vmem>>, vector<16x16xbf16>
    %c17_35 = arith.constant 17 : index
    %c64_36 = arith.constant 64 : index
    %30 = vector.load %arg8[%c17_35, %c64_36] : memref<34x160xbf16, #tpu.memory_space<vmem>>, vector<16x16xbf16>
    %c1_37 = arith.constant 1 : index
    %c32_38 = arith.constant 32 : index
    %31 = vector.load %arg8[%c1_37, %c32_38] : memref<34x160xbf16, #tpu.memory_space<vmem>>, vector<16x16xbf16>
    %c1_39 = arith.constant 1 : index
    %c48_40 = arith.constant 48 : index
    %32 = vector.load %arg8[%c1_39, %c48_40] : memref<34x160xbf16, #tpu.memory_space<vmem>>, vector<16x16xbf16>
    %c1_41 = arith.constant 1 : index
    %c64_42 = arith.constant 64 : index
    %33 = vector.load %arg8[%c1_41, %c64_42] : memref<34x160xbf16, #tpu.memory_space<vmem>>, vector<16x16xbf16>
    %34 = tpu.concatenate %25, %26, %27, %28, %29, %30, %31, %32, %33 in 1 : vector<16x16xbf16>, vector<16x16xbf16>, vector<16x16xbf16>, vector<16x16xbf16>, vector<16x16xbf16>, vector<16x16xbf16>, vector<16x16xbf16>, vector<16x16xbf16>, vector<16x16xbf16> -> vector<16x144xbf16>
    %c0_43 = arith.constant 0 : index
    %c0_44 = arith.constant 0 : index
    %35 = vector.load %arg3[%c0_43, %c0_44] : memref<144x16xbf16, #tpu.memory_space<vmem>>, vector<144x16xbf16>
    %cst_45 = arith.constant dense<0.000000e+00> : vector<16x16xf32>
    %36 = tpu.matmul %34, %35, %cst_45 {dimension_numbers = #tpu.dot_dimension_numbers<[1], [0], [0], [1], [0, 0, 1, 1], [], []>} : vector<16x144xbf16>, vector<144x16xbf16>, vector<16x16xf32> -> vector<16x16xf32>
    %c0_46 = arith.constant 0 : index
    %c0_47 = arith.constant 0 : index
    %37 = vector.load %arg4[%c0_46, %c0_47] : memref<1x16xf32, #tpu.memory_space<vmem>>, vector<1x16xf32>
    %38 = vector.broadcast %37 : vector<1x16xf32> to vector<16x16xf32>
    %39 = arith.addf %36, %38 : vector<16x16xf32>
    %cst_48 = arith.constant 0.000000e+00 : f32
    %40 = vector.broadcast %cst_48 : f32 to vector<16x16xf32>
    %41 = arith.maximumf %39, %40 : vector<16x16xf32>
    %c0_49 = arith.constant 0 : index
    %c64_50 = arith.constant 64 : index
    %42 = vector.load %arg8[%c0_49, %c64_50] : memref<34x160xbf16, #tpu.memory_space<vmem>>, vector<16x16xbf16>
    %c0_51 = arith.constant 0 : index
    %c80 = arith.constant 80 : index
    %43 = vector.load %arg8[%c0_51, %c80] : memref<34x160xbf16, #tpu.memory_space<vmem>>, vector<16x16xbf16>
    %c0_52 = arith.constant 0 : index
    %c96 = arith.constant 96 : index
    %44 = vector.load %arg8[%c0_52, %c96] : memref<34x160xbf16, #tpu.memory_space<vmem>>, vector<16x16xbf16>
    %c17_53 = arith.constant 17 : index
    %c64_54 = arith.constant 64 : index
    %45 = vector.load %arg8[%c17_53, %c64_54] : memref<34x160xbf16, #tpu.memory_space<vmem>>, vector<16x16xbf16>
    %c17_55 = arith.constant 17 : index
    %c80_56 = arith.constant 80 : index
    %46 = vector.load %arg8[%c17_55, %c80_56] : memref<34x160xbf16, #tpu.memory_space<vmem>>, vector<16x16xbf16>
    %c17_57 = arith.constant 17 : index
    %c96_58 = arith.constant 96 : index
    %47 = vector.load %arg8[%c17_57, %c96_58] : memref<34x160xbf16, #tpu.memory_space<vmem>>, vector<16x16xbf16>
    %c1_59 = arith.constant 1 : index
    %c64_60 = arith.constant 64 : index
    %48 = vector.load %arg8[%c1_59, %c64_60] : memref<34x160xbf16, #tpu.memory_space<vmem>>, vector<16x16xbf16>
    %c1_61 = arith.constant 1 : index
    %c80_62 = arith.constant 80 : index
    %49 = vector.load %arg8[%c1_61, %c80_62] : memref<34x160xbf16, #tpu.memory_space<vmem>>, vector<16x16xbf16>
    %c1_63 = arith.constant 1 : index
    %c96_64 = arith.constant 96 : index
    %50 = vector.load %arg8[%c1_63, %c96_64] : memref<34x160xbf16, #tpu.memory_space<vmem>>, vector<16x16xbf16>
    %51 = tpu.concatenate %42, %43, %44, %45, %46, %47, %48, %49, %50 in 1 : vector<16x16xbf16>, vector<16x16xbf16>, vector<16x16xbf16>, vector<16x16xbf16>, vector<16x16xbf16>, vector<16x16xbf16>, vector<16x16xbf16>, vector<16x16xbf16>, vector<16x16xbf16> -> vector<16x144xbf16>
    %c0_65 = arith.constant 0 : index
    %c0_66 = arith.constant 0 : index
    %52 = vector.load %arg3[%c0_65, %c0_66] : memref<144x16xbf16, #tpu.memory_space<vmem>>, vector<144x16xbf16>
    %cst_67 = arith.constant dense<0.000000e+00> : vector<16x16xf32>
    %53 = tpu.matmul %51, %52, %cst_67 {dimension_numbers = #tpu.dot_dimension_numbers<[1], [0], [0], [1], [0, 0, 1, 1], [], []>} : vector<16x144xbf16>, vector<144x16xbf16>, vector<16x16xf32> -> vector<16x16xf32>
    %c0_68 = arith.constant 0 : index
    %c0_69 = arith.constant 0 : index
    %54 = vector.load %arg4[%c0_68, %c0_69] : memref<1x16xf32, #tpu.memory_space<vmem>>, vector<1x16xf32>
    %55 = vector.broadcast %54 : vector<1x16xf32> to vector<16x16xf32>
    %56 = arith.addf %53, %55 : vector<16x16xf32>
    %cst_70 = arith.constant 0.000000e+00 : f32
    %57 = vector.broadcast %cst_70 : f32 to vector<16x16xf32>
    %58 = arith.maximumf %56, %57 : vector<16x16xf32>
    %c0_71 = arith.constant 0 : index
    %c96_72 = arith.constant 96 : index
    %59 = vector.load %arg8[%c0_71, %c96_72] : memref<34x160xbf16, #tpu.memory_space<vmem>>, vector<16x16xbf16>
    %c0_73 = arith.constant 0 : index
    %c112 = arith.constant 112 : index
    %60 = vector.load %arg8[%c0_73, %c112] : memref<34x160xbf16, #tpu.memory_space<vmem>>, vector<16x16xbf16>
    %c0_74 = arith.constant 0 : index
    %c128 = arith.constant 128 : index
    %61 = vector.load %arg8[%c0_74, %c128] : memref<34x160xbf16, #tpu.memory_space<vmem>>, vector<16x16xbf16>
    %c17_75 = arith.constant 17 : index
    %c96_76 = arith.constant 96 : index
    %62 = vector.load %arg8[%c17_75, %c96_76] : memref<34x160xbf16, #tpu.memory_space<vmem>>, vector<16x16xbf16>
    %c17_77 = arith.constant 17 : index
    %c112_78 = arith.constant 112 : index
    %63 = vector.load %arg8[%c17_77, %c112_78] : memref<34x160xbf16, #tpu.memory_space<vmem>>, vector<16x16xbf16>
    %c17_79 = arith.constant 17 : index
    %c128_80 = arith.constant 128 : index
    %64 = vector.load %arg8[%c17_79, %c128_80] : memref<34x160xbf16, #tpu.memory_space<vmem>>, vector<16x16xbf16>
    %c1_81 = arith.constant 1 : index
    %c96_82 = arith.constant 96 : index
    %65 = vector.load %arg8[%c1_81, %c96_82] : memref<34x160xbf16, #tpu.memory_space<vmem>>, vector<16x16xbf16>
    %c1_83 = arith.constant 1 : index
    %c112_84 = arith.constant 112 : index
    %66 = vector.load %arg8[%c1_83, %c112_84] : memref<34x160xbf16, #tpu.memory_space<vmem>>, vector<16x16xbf16>
    %c1_85 = arith.constant 1 : index
    %c128_86 = arith.constant 128 : index
    %67 = vector.load %arg8[%c1_85, %c128_86] : memref<34x160xbf16, #tpu.memory_space<vmem>>, vector<16x16xbf16>
    %68 = tpu.concatenate %59, %60, %61, %62, %63, %64, %65, %66, %67 in 1 : vector<16x16xbf16>, vector<16x16xbf16>, vector<16x16xbf16>, vector<16x16xbf16>, vector<16x16xbf16>, vector<16x16xbf16>, vector<16x16xbf16>, vector<16x16xbf16>, vector<16x16xbf16> -> vector<16x144xbf16>
    %c0_87 = arith.constant 0 : index
    %c0_88 = arith.constant 0 : index
    %69 = vector.load %arg3[%c0_87, %c0_88] : memref<144x16xbf16, #tpu.memory_space<vmem>>, vector<144x16xbf16>
    %cst_89 = arith.constant dense<0.000000e+00> : vector<16x16xf32>
    %70 = tpu.matmul %68, %69, %cst_89 {dimension_numbers = #tpu.dot_dimension_numbers<[1], [0], [0], [1], [0, 0, 1, 1], [], []>} : vector<16x144xbf16>, vector<144x16xbf16>, vector<16x16xf32> -> vector<16x16xf32>
    %c0_90 = arith.constant 0 : index
    %c0_91 = arith.constant 0 : index
    %71 = vector.load %arg4[%c0_90, %c0_91] : memref<1x16xf32, #tpu.memory_space<vmem>>, vector<1x16xf32>
    %72 = vector.broadcast %71 : vector<1x16xf32> to vector<16x16xf32>
    %73 = arith.addf %70, %72 : vector<16x16xf32>
    %cst_92 = arith.constant 0.000000e+00 : f32
    %74 = vector.broadcast %cst_92 : f32 to vector<16x16xf32>
    %75 = arith.maximumf %73, %74 : vector<16x16xf32>
    %76 = tpu.concatenate %24, %41, %58, %75 in 1 : vector<16x16xf32>, vector<16x16xf32>, vector<16x16xf32>, vector<16x16xf32> -> vector<16x64xf32>
    %77 = arith.truncf %76 : vector<16x64xf32> to vector<16x64xbf16>
    %c0_93 = arith.constant 0 : index
    %c0_94 = arith.constant 0 : index
    %78 = vector.load %arg5[%c0_93, %c0_94] : memref<64x128xbf16, #tpu.memory_space<vmem>>, vector<64x128xbf16>
    %cst_95 = arith.constant dense<0.000000e+00> : vector<16x128xf32>
    %79 = tpu.matmul %77, %78, %cst_95 {dimension_numbers = #tpu.dot_dimension_numbers<[1], [0], [0], [1], [0, 0, 1, 1], [], []>} : vector<16x64xbf16>, vector<64x128xbf16>, vector<16x128xf32> -> vector<16x128xf32>
    %c0_96 = arith.constant 0 : index
    %c0_97 = arith.constant 0 : index
    %80 = vector.load %arg6[%c0_96, %c0_97] : memref<1x128xf32, #tpu.memory_space<vmem>>, vector<1x128xf32>
    %81 = vector.broadcast %80 : vector<1x128xf32> to vector<16x128xf32>
    %82 = arith.addf %79, %81 : vector<16x128xf32>
    %c0_98 = arith.constant 0 : index
    %c0_99 = arith.constant 0 : index
    %83 = vector.load %arg7[%c0_98, %c0_99] : memref<16x128xf32, #tpu.memory_space<vmem>>, vector<16x128xf32>
    tpu.vector_store %arg7[%c0_98, %c0_99], %82 {strides = array<i32>} : memref<16x128xf32, #tpu.memory_space<vmem>>, vector<16x128xf32>,
    return
  }
  func.func @transform_0(%arg0: i32) -> (i32, i32, i32) {
    %c0_i32 = arith.constant 0 : i32
    %c0_i32_0 = arith.constant 0 : i32
    %c0_i32_1 = arith.constant 0 : i32
    return %arg0, %c0_i32, %c0_i32_0 : i32, i32, i32
  }
  func.func @transform_1(%arg0: i32) -> (i32, i32) {
    %c0_i32 = arith.constant 0 : i32
    %c0_i32_0 = arith.constant 0 : i32
    %c0_i32_1 = arith.constant 0 : i32
    return %c0_i32, %c0_i32_0 : i32, i32
  }
  func.func @transform_2(%arg0: i32) -> (i32, i32) {
    %c0_i32 = arith.constant 0 : i32
    %c0_i32_0 = arith.constant 0 : i32
    %c0_i32_1 = arith.constant 0 : i32
    return %c0_i32, %c0_i32_0 : i32, i32
  }
  func.func @transform_3(%arg0: i32) -> (i32, i32) {
    %c0_i32 = arith.constant 0 : i32
    %c0_i32_0 = arith.constant 0 : i32
    %c0_i32_1 = arith.constant 0 : i32
    return %c0_i32, %c0_i32_0 : i32, i32
  }
  func.func @transform_4(%arg0: i32) -> (i32, i32) {
    %c0_i32 = arith.constant 0 : i32
    %c0_i32_0 = arith.constant 0 : i32
    %c0_i32_1 = arith.constant 0 : i32
    return %c0_i32, %c0_i32_0 : i32, i32
  }
  func.func @transform_5(%arg0: i32) -> (i32, i32) {
    %c0_i32 = arith.constant 0 : i32
    %c0_i32_0 = arith.constant 0 : i32
    %c0_i32_1 = arith.constant 0 : i32
    return %c0_i32, %c0_i32_0 : i32, i32
  }
  func.func @transform_6(%arg0: i32) -> (i32, i32) {
    %c0_i32 = arith.constant 0 : i32
    %c0_i32_0 = arith.constant 0 : i32
    return %arg0, %c0_i32 : i32, i32
  }
}

</mosaic_0001>

<llo_original>
// kernel: striding_subsampling_forward.1
$region0: #{striding_subsampling_forward.1}
  #allocation0 [shape = 'u32[]', space=smem, size = 0x4, offset = 0x4, fixed_abs, tag = 'smem constant byte address 0x4 - core index']
  #allocation1 [shape = 'u32[72,128]{1,0:T(1,128)}', space=vmem, size = 0x9000, scoped, tag = 'internal scratch']
  #allocation2 [shape = 'bf16[34,160]{1,0:T(8,128)(2,1)}', space=vmem, size = 0x5000, scoped, tag = 'scratch operand']
  %s0 = inlined_call_operand.vmem [shape: bf16[2,34,128], index: 0, kind: input, shape index: {}]
  %s1 = inlined_call_operand.vmem [shape: bf16[128,160], index: 1, kind: input, shape index: {}]
  %s2 = inlined_call_operand.vmem [shape: bf16[144,16], index: 2, kind: input, shape index: {}]
  %s3 = inlined_call_operand.vmem [shape: f32[1,16], index: 3, kind: input, shape index: {}]
  %s4 = inlined_call_operand.vmem [shape: bf16[64,128], index: 4, kind: input, shape index: {}]
  %s5 = inlined_call_operand.vmem [shape: f32[1,128], index: 5, kind: input, shape index: {}]
  %s6 = inlined_call_operand.vmem [shape: f32[32,128], index: 6, kind: output, shape index: {}]
  %s7 = sld [smem:[#allocation0]]
  $region57: #{striding_subsampling_forward.1} parent=0
    _
  %s9 = ssub.s32 1, %s7
  %s10 = scalar_select 0, %s9, %s7
  loop: start=0, step=1, limit=4
  $region2: #{striding_subsampling_forward.1} parent=0 // loop_pre_header
    _
  $region3: #{striding_subsampling_forward.1} parent=0 // loop_header
    %s12 = sphi 0, %s16
    %p13 = scmp.ge.s32.totalorder %s12, 4
    %s22 = sphi 0, %s24
    %s25 = sphi 0, %s22
    %s26 = sphi 0, %s25
    %s42 = sphi 0, %s26
    %s46 = sphi 0, %s46
    %s48 = sphi 0, %s46
    %s49 = sphi 0, %s48
    %s63 = sphi 0, %s49
    %s67 = sphi 0, %s67
    %s69 = sphi 0, %s67
    %s70 = sphi 0, %s69
    %s84 = sphi 0, %s70
    %s88 = sphi 0, %s88
    %s90 = sphi 0, %s88
    %s91 = sphi 0, %s90
    %s105 = sphi 0, %s91
    %s109 = sphi 0, %s109
    %s111 = sphi 0, %s109
    %s112 = sphi 0, %s111
    %s126 = sphi 0, %s112
    %s130 = sphi 0, %s130
    %s132 = sphi 0, %s130
    %s133 = sphi 0, %s132
    %s147 = sphi 0, %s133
    %s153 = sphi 0, %s155
    %s156 = sphi 0, %s153
    %s157 = sphi 0, %s156
    %s173 = sphi 0, %s157
  $region4: #{striding_subsampling_forward.1} parent=0 // loop_header_branch
    %15 = sbr.rel (%p13) target = $region8
  $region5: #{striding_subsampling_forward.1} parent=0 // loop_body
    %s17 = ssub.s32 %s12, 1
    %s18 = ssub.s32 %s12, 2
    %s19 = sadd.s32 %s12, 1
    %s20 = ssub.s32 %s12, %s19
    %p21 = scmp.eq.s32.totalorder %s20, 0
    %s23 = sadd.s32 %s22, 1
    %s24 = scalar_select %p21, %s22, %s23
    %p27 = pneg %p21
    %p28 = scmp.eq.s32.totalorder %s12, 1
    %p29 = por %p27, %p28
    %p30 = scmp.ne.s32.totalorder %s22, %s25
    %p31 = scmp.eq.s32.totalorder %s12, 0
    %p32 = por %p30, %p31
    %p33 = scmp.ne.s32.totalorder %s22, %s25
    %p34 = scmp.eq.s32.totalorder %s17, 1
    %p35 = por %p33, %p34
    %p36 = scmp.ne.s32.totalorder %s25, %s26
    %p37 = scmp.eq.s32.totalorder %s17, 0
    %p38 = por %p36, %p37
    %p39 = scmp.ne.s32.totalorder %s25, %s26
    %p40 = scmp.eq.s32.totalorder %s18, 1
    %p41 = por %p39, %p40
    %p43 = scmp.ne.s32.totalorder %s26, %s42
    %p44 = scmp.eq.s32.totalorder %s18, 0
    %p45 = por %p43, %p44
    %s47 = sadd.s32 %s46, 1
    %p50 = scmp.eq.s32.totalorder %s12, 1
    %p51 = scmp.ne.s32.totalorder %s46, %s48
    %p52 = scmp.eq.s32.totalorder %s12, 0
    %p53 = por %p51, %p52
    %p54 = scmp.ne.s32.totalorder %s46, %s48
    %p55 = scmp.eq.s32.totalorder %s17, 1
    %p56 = por %p54, %p55
    %p57 = scmp.ne.s32.totalorder %s48, %s49
    %p58 = scmp.eq.s32.totalorder %s17, 0
    %p59 = por %p57, %p58
    %p60 = scmp.ne.s32.totalorder %s48, %s49
    %p61 = scmp.eq.s32.totalorder %s18, 1
    %p62 = por %p60, %p61
    %p64 = scmp.ne.s32.totalorder %s49, %s63
    %p65 = scmp.eq.s32.totalorder %s18, 0
    %p66 = por %p64, %p65
    %s68 = sadd.s32 %s67, 1
    %p71 = scmp.eq.s32.totalorder %s12, 1
    %p72 = scmp.ne.s32.totalorder %s67, %s69
    %p73 = scmp.eq.s32.totalorder %s12, 0
    %p74 = por %p72, %p73
    %p75 = scmp.ne.s32.totalorder %s67, %s69
    %p76 = scmp.eq.s32.totalorder %s17, 1
    %p77 = por %p75, %p76
    %p78 = scmp.ne.s32.totalorder %s69, %s70
    %p79 = scmp.eq.s32.totalorder %s17, 0
    %p80 = por %p78, %p79
    %p81 = scmp.ne.s32.totalorder %s69, %s70
    %p82 = scmp.eq.s32.totalorder %s18, 1
    %p83 = por %p81, %p82
    %p85 = scmp.ne.s32.totalorder %s70, %s84
    %p86 = scmp.eq.s32.totalorder %s18, 0
    %p87 = por %p85, %p86
    %s89 = sadd.s32 %s88, 1
    %p92 = scmp.eq.s32.totalorder %s12, 1
    %p93 = scmp.ne.s32.totalorder %s88, %s90
    %p94 = scmp.eq.s32.totalorder %s12, 0
    %p95 = por %p93, %p94
    %p96 = scmp.ne.s32.totalorder %s88, %s90
    %p97 = scmp.eq.s32.totalorder %s17, 1
    %p98 = por %p96, %p97
    %p99 = scmp.ne.s32.totalorder %s90, %s91
    %p100 = scmp.eq.s32.totalorder %s17, 0
    %p101 = por %p99, %p100
    %p102 = scmp.ne.s32.totalorder %s90, %s91
    %p103 = scmp.eq.s32.totalorder %s18, 1
    %p104 = por %p102, %p103
    %p106 = scmp.ne.s32.totalorder %s91, %s105
    %p107 = scmp.eq.s32.totalorder %s18, 0
    %p108 = por %p106, %p107
    %s110 = sadd.s32 %s109, 1
    %p113 = scmp.eq.s32.totalorder %s12, 1
    %p114 = scmp.ne.s32.totalorder %s109, %s111
    %p115 = scmp.eq.s32.totalorder %s12, 0
    %p116 = por %p114, %p115
    %p117 = scmp.ne.s32.totalorder %s109, %s111
    %p118 = scmp.eq.s32.totalorder %s17, 1
    %p119 = por %p117, %p118
    %p120 = scmp.ne.s32.totalorder %s111, %s112
    %p121 = scmp.eq.s32.totalorder %s17, 0
    %p122 = por %p120, %p121
    %p123 = scmp.ne.s32.totalorder %s111, %s112
    %p124 = scmp.eq.s32.totalorder %s18, 1
    %p125 = por %p123, %p124
    %p127 = scmp.ne.s32.totalorder %s112, %s126
    %p128 = scmp.eq.s32.totalorder %s18, 0
    %p129 = por %p127, %p128
    %s131 = sadd.s32 %s130, 1
    %p134 = scmp.eq.s32.totalorder %s12, 1
    %p135 = scmp.ne.s32.totalorder %s130, %s132
    %p136 = scmp.eq.s32.totalorder %s12, 0
    %p137 = por %p135, %p136
    %p138 = scmp.ne.s32.totalorder %s130, %s132
    %p139 = scmp.eq.s32.totalorder %s17, 1
    %p140 = por %p138, %p139
    %p141 = scmp.ne.s32.totalorder %s132, %s133
    %p142 = scmp.eq.s32.totalorder %s17, 0
    %p143 = por %p141, %p142
    %p144 = scmp.ne.s32.totalorder %s132, %s133
    %p145 = scmp.eq.s32.totalorder %s18, 1
    %p146 = por %p144, %p145
    %p148 = scmp.ne.s32.totalorder %s133, %s147
    %p149 = scmp.eq.s32.totalorder %s18, 0
    %p150 = por %p148, %p149
    %s151 = ssub.s32 %s12, %s19
    %p152 = scmp.eq.s32.totalorder %s151, 0
    %s154 = sadd.s32 %s153, 1
    %s155 = scalar_select %p152, %s153, %s154
    %p158 = pneg %p152
    %p159 = scmp.eq.s32.totalorder %s12, 1
    %p160 = por %p158, %p159
    %p161 = scmp.ne.s32.totalorder %s153, %s156
    %p162 = scmp.eq.s32.totalorder %s12, 0
    %p163 = por %p161, %p162
    %p164 = scmp.ne.s32.totalorder %s153, %s156
    %p165 = scmp.eq.s32.totalorder %s17, 1
    %p166 = por %p164, %p165
    %p167 = scmp.ne.s32.totalorder %s156, %s157
    %p168 = scmp.eq.s32.totalorder %s17, 0
    %p169 = por %p167, %p168
    %p170 = scmp.ne.s32.totalorder %s156, %s157
    %p171 = scmp.eq.s32.totalorder %s18, 1
    %p172 = por %p170, %p171
    %p174 = scmp.ne.s32.totalorder %s157, %s173
    %p175 = scmp.eq.s32.totalorder %s18, 0
    %p176 = por %p174, %p175
    %p177 = scmp.le.s32.totalorder 1, %s12
    %p178 = scmp.lt.s32.totalorder %s12, 3
    %p179 = pnand %p177, %p178
    %p180 = pneg %p179
    // Predicated region
    $region9: #{striding_subsampling_forward.1} parent=5 // pred_check
      _
    $region10: #{striding_subsampling_forward.1} parent=5 // pred_check_branch
      %182 = sbr.rel (%p179) target = $region12
    $region11: #{striding_subsampling_forward.1} parent=5 // pred_region
      %s183 = ssub.s32 %s12, 1
      // Predicated region
      $region13: #{striding_subsampling_forward.1} parent=11 // pred_check
        %p184 = pneg %p59
      $region14: #{striding_subsampling_forward.1} parent=11 // pred_check_branch
        %186 = sbr.rel (%p184) target = $region16
      $region15: #{striding_subsampling_forward.1} parent=11 // pred_region
        _
      $region16: #{striding_subsampling_forward.1} parent=11 // pred_fallthru
        _
      // Predicated region
      $region17: #{striding_subsampling_forward.1} parent=11 // pred_check
        %p187 = pneg %p80
      $region18: #{striding_subsampling_forward.1} parent=11 // pred_check_branch
        %189 = sbr.rel (%p187) target = $region20
      $region19: #{striding_subsampling_forward.1} parent=11 // pred_region
        _
      $region20: #{striding_subsampling_forward.1} parent=11 // pred_fallthru
        _
      // Predicated region
      $region21: #{striding_subsampling_forward.1} parent=11 // pred_check
        %p190 = pneg %p101
      $region22: #{striding_subsampling_forward.1} parent=11 // pred_check_branch
        %192 = sbr.rel (%p190) target = $region24
      $region23: #{striding_subsampling_forward.1} parent=11 // pred_region
        _
      $region24: #{striding_subsampling_forward.1} parent=11 // pred_fallthru
        _
      // Predicated region
      $region25: #{striding_subsampling_forward.1} parent=11 // pred_check
        %p193 = pneg %p122
      $region26: #{striding_subsampling_forward.1} parent=11 // pred_check_branch
        %195 = sbr.rel (%p193) target = $region28
      $region27: #{striding_subsampling_forward.1} parent=11 // pred_region
        _
      $region28: #{striding_subsampling_forward.1} parent=11 // pred_fallthru
        _
      // Predicated region
      $region29: #{striding_subsampling_forward.1} parent=11 // pred_check
        %p196 = pneg %p143
      $region30: #{striding_subsampling_forward.1} parent=11 // pred_check_branch
        %198 = sbr.rel (%p196) target = $region32
      $region31: #{striding_subsampling_forward.1} parent=11 // pred_region
        _
      $region32: #{striding_subsampling_forward.1} parent=11 // pred_fallthru
        _
    $region12: #{striding_subsampling_forward.1} parent=5 // pred_fallthru
      _
    %p199 = scmp.lt.s32.totalorder %s12, 2
    // Predicated region
    $region33: #{striding_subsampling_forward.1} parent=5 // pred_check
      %p200 = pneg %p199
    $region34: #{striding_subsampling_forward.1} parent=5 // pred_check_branch
      %202 = sbr.rel (%p200) target = $region36
    $region35: #{striding_subsampling_forward.1} parent=5 // pred_region
      // Predicated region
      $region37: #{striding_subsampling_forward.1} parent=35 // pred_check
        %p203 = pneg %p32
      $region38: #{striding_subsampling_forward.1} parent=35 // pred_check_branch
        %205 = sbr.rel (%p203) target = $region40
      $region39: #{striding_subsampling_forward.1} parent=35 // pred_region
        %p206 = scmp.lt.s32.totalorder %s12, 1
        %s207 = scalar_select %p206, %s12, 1
        %s208 = smul.addr %s207, 5
        %s209 = smul.addr %s208, 4
        %s210 = scalar_lea.vmem %s0, %s209
      $region40: #{striding_subsampling_forward.1} parent=35 // pred_fallthru
        _
    $region36: #{striding_subsampling_forward.1} parent=5 // pred_fallthru
      _
    %p211 = scmp.le.s32.totalorder 1, %s12
    %p212 = scmp.lt.s32.totalorder %s12, 3
    %p213 = pnand %p211, %p212
    %p214 = pneg %p213
    // Predicated region
    $region41: #{striding_subsampling_forward.1} parent=5 // pred_check
      _
    $region42: #{striding_subsampling_forward.1} parent=5 // pred_check_branch
      %216 = sbr.rel (%p213) target = $region44
    $region43: #{striding_subsampling_forward.1} parent=5 // pred_region
      %s217 = ssub.s32 %s12, 1
      %p218 = scmp.lt.s32.totalorder %s17, 1
      %s219 = scalar_select %p218, %s17, 1
      %s220 = smul.addr %s219, 5
      %s221 = smul.addr %s220, 4
      %s222 = scalar_lea.vmem %s0, %s221
      %p223 = pneg %p38
      %p224 = pneg %p35
      %p225 = pneg %p59
      %p226 = pneg %p56
      %p227 = pneg %p80
      %p228 = pneg %p77
      %p229 = pneg %p101
      %p230 = pneg %p98
      %p231 = pneg %p122
      %p232 = pneg %p119
      %p233 = pneg %p143
      %p234 = pneg %p140
      %p235 = pneg %p169
      %p236 = pneg %p166
      %s237 = smul.u32 2, %s17
      %p238 = scmp.lt.s32.totalorder %s237, 3
      %s239 = scalar_select %p238, %s237, 3
      %s240 = smul.addr %s239, 8
      %s241 = scalar_lea.vmem %s6, %s240
      %p242 = scmp.lt.s32.totalorder %s17, 1
      %s243 = scalar_select %p242, %s17, 1
      %s244 = smul.addr %s243, 5
      %s245 = smul.addr %s244, 4
      %s246 = scalar_lea.vmem %s0, %s245
      %s247 = smul.u32 2, %s17
      %p248 = scmp.lt.s32.totalorder %s247, 3
      %s249 = scalar_select %p248, %s247, 3
      %s250 = smul.addr %s249, 8
      %s251 = scalar_lea.vmem %s6, %s250
      %s252 = smul.u32 2, %s17
      %v254 = vld [vmem:[%s246] sm:$0xf]
      %v255 = vld [vmem:[%s246 + $0x4] sm:$0xf]
      %v256 = vld [vmem:[%s246 + $0x8] sm:$0xf]
      %v257 = vld [vmem:[%s246 + $0xc] sm:$0xf]
      %v258 = vld [vmem:[%s246 + $0x10] sm:$0x1]
      %v259 = vld [vmem:[%s1] sm:$0xff]
      %v260 = vld [vmem:[%s1 + $0x8] sm:$0xff]
      %v261 = vld [vmem:[%s1 + $0x10] sm:$0xff]
      %v262 = vld [vmem:[%s1 + $0x18] sm:$0xff]
      %v263 = vld [vmem:[%s1 + $0x20] sm:$0xff]
      %v264 = vld [vmem:[%s1 + $0x28] sm:$0xff]
      %v265 = vld [vmem:[%s1 + $0x30] sm:$0xff]
      %v266 = vld [vmem:[%s1 + $0x38] sm:$0xff]
      %v267 = vld [vmem:[%s1 + $0x40] sm:$0xff]
      %v268 = vld [vmem:[%s1 + $0x48] sm:$0xff]
      %v269 = vld [vmem:[%s1 + $0x50] sm:$0xff]
      %v270 = vld [vmem:[%s1 + $0x58] sm:$0xff]
      %v271 = vld [vmem:[%s1 + $0x60] sm:$0xff]
      %v272 = vld [vmem:[%s1 + $0x68] sm:$0xff]
      %v273 = vld [vmem:[%s1 + $0x70] sm:$0xff]
      %v274 = vld [vmem:[%s1 + $0x78] sm:$0xff]
      %v280 = vunpack.c.l.b16 %v254
      %v281 = vunpack.c.l.b16 %v255
      %v282 = vunpack.c.l.b16 %v256
      %v283 = vunpack.c.l.b16 %v257
      %v284 = vunpack.c.l.b16 %v258
      %v285 = vpack.c.b16 %v281, %v280
      %v286 = vpack.c.b16 %v283, %v282
      %v287 = vpack.c.b16 %v284, %v284
      %v307 = vunpack.c.l.b16 %v259
      %v308 = vunpack.c.h.b16 %v259
      %v309 = vunpack.c.l.b16 %v260
      %v310 = vunpack.c.h.b16 %v260
      %v311 = vunpack.c.l.b16 %v261
      %v312 = vunpack.c.h.b16 %v261
      %v313 = vunpack.c.l.b16 %v262
      %v314 = vunpack.c.h.b16 %v262
      %v315 = vunpack.c.l.b16 %v263
      %v316 = vunpack.c.h.b16 %v263
      %v317 = vunpack.c.l.b16 %v264
      %v318 = vunpack.c.h.b16 %v264
      %v319 = vunpack.c.l.b16 %v265
      %v320 = vunpack.c.h.b16 %v265
      %v321 = vunpack.c.l.b16 %v266
      %v322 = vunpack.c.h.b16 %v266
      %v323 = vunpack.c.l.b16 %v267
      %v324 = vunpack.c.h.b16 %v267
      %v325 = vunpack.c.l.b16 %v268
      %v326 = vunpack.c.h.b16 %v268
      %v327 = vunpack.c.l.b16 %v269
      %v328 = vunpack.c.h.b16 %v269
      %v329 = vunpack.c.l.b16 %v270
      %v330 = vunpack.c.h.b16 %v270
      %v331 = vunpack.c.l.b16 %v271
      %v332 = vunpack.c.h.b16 %v271
      %v333 = vunpack.c.l.b16 %v272
      %v334 = vunpack.c.h.b16 %v272
      %v335 = vunpack.c.l.b16 %v273
      %v336 = vunpack.c.h.b16 %v273
      %v337 = vunpack.c.l.b16 %v274
      %v338 = vunpack.c.h.b16 %v274
      %v339 = vpack.c.b16 %v309, %v307
      %v340 = vpack.c.b16 %v310, %v308
      %v341 = vpack.c.b16 %v313, %v311
      %v342 = vpack.c.b16 %v314, %v312
      %v343 = vpack.c.b16 %v317, %v315
      %v344 = vpack.c.b16 %v318, %v316
      %v345 = vpack.c.b16 %v321, %v319
      %v346 = vpack.c.b16 %v322, %v320
      %v347 = vpack.c.b16 %v325, %v323
      %v348 = vpack.c.b16 %v326, %v324
      %v349 = vpack.c.b16 %v329, %v327
      %v350 = vpack.c.b16 %v330, %v328
      %v351 = vpack.c.b16 %v333, %v331
      %v352 = vpack.c.b16 %v334, %v332
      %v353 = vpack.c.b16 %v337, %v335
      %v354 = vpack.c.b16 %v338, %v336
      %371 = vmatpush.bf16.msra.mxu0 %v353
      %372 = vmatpush.bf16.msra.mxu0 %v351
      %373 = vmatpush.bf16.msra.mxu0 %v349
      %374 = vmatpush.bf16.msra.mxu0 %v347
      %375 = vmatpush.bf16.msra.mxu0 %v345
      %376 = vmatpush.bf16.msra.mxu0 %v343
      %377 = vmatpush.bf16.msra.mxu0 %v341
      %378 = vmatpush.bf16.msra.mxu0 %v339
      %379 = vmatmul.bf16.gmra.mxu0 %v285
      %v380 = vpop.f32.mrf.mxu0
      %v381 = vadd.f32 0.0, %v380
      %v382 = vpop.f32.mrf.mxu0
      %v383 = vadd.f32 0.0, %v382
      %384 = vmatmul.bf16.gmra.mxu0 %v286
      %v385 = vpop.f32.mrf.mxu0
      %v386 = vadd.f32 0.0, %v385
      %v387 = vpop.f32.mrf.mxu0
      %v388 = vadd.f32 0.0, %v387
      %389 = vmatmul.bf16.gmra.mxu0 %v287
      %v390 = vpop.f32.mrf.mxu0
      %v391 = vadd.f32 0.0, %v390
      %v392 = vpop.f32.mrf.mxu0
      %393 = vdwg.mxu0
      %394 = vmatpush.bf16.msra.mxu0 %v354
      %395 = vmatpush.bf16.msra.mxu0 %v352
      %396 = vmatpush.bf16.msra.mxu0 %v350
      %397 = vmatpush.bf16.msra.mxu0 %v348
      %398 = vmatpush.bf16.msra.mxu0 %v346
      %399 = vmatpush.bf16.msra.mxu0 %v344
      %400 = vmatpush.bf16.msra.mxu0 %v342
      %401 = vmatpush.bf16.msra.mxu0 %v340
      %402 = vmatmul.bf16.gmra.mxu0 %v285
      %v403 = vpop.f32.mrf.mxu0
      %v404 = vadd.f32 0.0, %v403
      %v405 = vpop.f32.mrf.mxu0
      %v406 = vadd.f32 0.0, %v405
      %407 = vmatmul.bf16.gmra.mxu0 %v286
      %v408 = vpop.f32.mrf.mxu0
      %v409 = vadd.f32 0.0, %v408
      %v410 = vpop.f32.mrf.mxu0
      %v411 = vadd.f32 0.0, %v410
      %412 = vmatmul.bf16.gmra.mxu0 %v287
      %v413 = vpop.f32.mrf.mxu0
      %v414 = vadd.f32 0.0, %v413
      %v415 = vpop.f32.mrf.mxu0
      %416 = vdwg.mxu0
      %v417 = vmax.f32 %v381, 0.0
      %v418 = vmax.f32 %v404, 0.0
      %v419 = vmax.f32 %v383, 0.0
      %v420 = vmax.f32 %v406, 0.0
      %v421 = vmax.f32 %v386, 0.0
      %v422 = vmax.f32 %v409, 0.0
      %v423 = vmax.f32 %v388, 0.0
      %v424 = vmax.f32 %v411, 0.0
      %v425 = vmax.f32 %v391, 0.0
      %v426 = vmax.f32 %v414, 0.0
      %v427 = vpack.c.bf16 %v418, %v417
      %v428 = vpack.c.bf16 %v420, %v419
      %v429 = vpack.c.bf16 %v422, %v421
      %v430 = vpack.c.bf16 %v424, %v423
      %v431 = vpack.c.bf16 %v426, %v425
      %vm432 = vcmask 1043456
      %vm433 = vcmask 261124
      %vm434 = vmor %vm433, %vm432
      %435 = vst.msk [vmem:[#allocation2] sm:$0xff] %vm434, %v427
      %436 = vst.msk [vmem:[#allocation2 + $0x8] sm:$0xff] %vm434, %v428
      %437 = vst.msk [vmem:[#allocation2 + $0x10] sm:$0xff] %vm434, %v429
      %438 = vst.msk [vmem:[#allocation2 + $0x18] sm:$0xff] %vm434, %v430
      %vm439 = vcmask 1040384
      %vm440 = vcmask 258052
      %vm441 = vmor %vm440, %vm439
      %442 = vst.msk [vmem:[#allocation2 + $0x20] sm:$0x11] %vm441, %v431
      %v443 = vld [vmem:[#allocation2] sm:$0xf]
      %v444 = vld [vmem:[#allocation2 + $0x8] sm:$0xf]
      %v445 = vld [vmem:[#allocation2 + $0x10] sm:$0xf]
      %v446 = vld [vmem:[#allocation2 + $0x18] sm:$0xf]
      %v447 = vld [vmem:[#allocation2 + $0x20] sm:$0x1]
      %v448 = vld [vmem:[#allocation2 + $0x10] sm:$0x1]
      %v451 = vunpack.c.l.b16 %v443
      %v452 = vunpack.c.l.b16 %v444
      %v453 = vpack.c.b16 %v452, %v451
      %v457 = vunpack.c.l.b16 %v445
      %v458 = vunpack.c.l.b16 %v446
      %v459 = vunpack.c.l.b16 %v447
      %v460 = vpack.c.b16 %v458, %v457
      %v461 = vpack.c.b16 %v459, %v459
      %vm462 = vsmask.f32 7424
      %v464 = vshrl.u32 %v460, 16
      %v466 = vshll.u32 %v460, 16
      %v468 = vrot.slane %v466, 1
      %v469 = vor.u32 %v464, %v468
      %v471 = vshll.u32 %v461, 16
      %v473 = vrot.slane %v471, 1
      %v474 = vsel %vm462, %v469, %v473
      %475 = vrot.lane.b32.xlu0 %v474, 48
      %v476 = vpop.permute.xlu0 %475
      %v478 = vunpack.c.l.b16 %v448
      %v479 = vpack.c.b16 %v478, %v478
      %v481 = vshrl.u32 %v453, 16
      %v483 = vshll.u32 %v453, 16
      %v485 = vrot.slane %v483, 1
      %v486 = vor.u32 %v481, %v485
      %v488 = vshll.u32 %v479, 16
      %v490 = vrot.slane %v488, 1
      %v491 = vsel %vm462, %v486, %v490
      %492 = vrot.lane.b32.xlu0 %v491, 96
      %v493 = vpop.permute.xlu0 %492
      %vm494 = vcmask 130048
      %vm495 = vcmask 261120
      %v496 = vsel %vm495, %v453, %v453
      %vm497 = vcmask 392192
      %v499 = vsel %vm497, %v496, %v476
      %vm500 = vcmask 523264
      %v501 = vsel %vm500, %v499, %v476
      %vm502 = vcmask 654336
      %v503 = vsel %vm502, %v501, %v476
      %vm504 = vcmask 785408
      %v506 = vsel %vm504, %v503, %v493
      %vm507 = vcmask 916480
      %v508 = vsel %vm507, %v506, %v493
      %v510 = vld [vmem:[%s2] sm:$0xf]
      %v511 = vld [vmem:[%s2 + $0x4] sm:$0xf]
      %v512 = vld [vmem:[%s2 + $0x8] sm:$0xf]
      %v513 = vld [vmem:[%s2 + $0xc] sm:$0xf]
      %v514 = vld [vmem:[%s2 + $0x10] sm:$0xf]
      %v515 = vld [vmem:[%s2 + $0x14] sm:$0xf]
      %v516 = vld [vmem:[%s2 + $0x18] sm:$0xf]
      %v517 = vld [vmem:[%s2 + $0x1c] sm:$0xf]
      %v518 = vld [vmem:[%s2 + $0x20] sm:$0xf]
      %v519 = vld [vmem:[%s2 + $0x24] sm:$0xf]
      %v520 = vld [vmem:[%s2 + $0x28] sm:$0xf]
      %v521 = vld [vmem:[%s2 + $0x2c] sm:$0xf]
      %v522 = vld [vmem:[%s2 + $0x30] sm:$0xf]
      %v523 = vld [vmem:[%s2 + $0x34] sm:$0xf]
      %v524 = vld [vmem:[%s2 + $0x38] sm:$0xf]
      %v525 = vld [vmem:[%s2 + $0x3c] sm:$0xf]
      %v526 = vld [vmem:[%s2 + $0x40] sm:$0xf]
      %v527 = vld [vmem:[%s2 + $0x44] sm:$0xf]
      %v528 = vld [vmem:[%s3] sm:$0x1]
      %v530 = vperm.slane %v528, 0
      %v550 = vunpack.c.l.b16 %v510
      %v551 = vunpack.c.l.b16 %v511
      %v552 = vunpack.c.l.b16 %v512
      %v553 = vunpack.c.l.b16 %v513
      %v554 = vunpack.c.l.b16 %v514
      %v555 = vunpack.c.l.b16 %v515
      %v556 = vunpack.c.l.b16 %v516
      %v557 = vunpack.c.l.b16 %v517
      %v558 = vunpack.c.l.b16 %v518
      %v559 = vunpack.c.l.b16 %v519
      %v560 = vunpack.c.l.b16 %v520
      %v561 = vunpack.c.l.b16 %v521
      %v562 = vunpack.c.l.b16 %v522
      %v563 = vunpack.c.l.b16 %v523
      %v564 = vunpack.c.l.b16 %v524
      %v565 = vunpack.c.l.b16 %v525
      %v566 = vunpack.c.l.b16 %v526
      %v567 = vunpack.c.l.b16 %v527
      %v568 = vpack.c.b16 %v551, %v550
      %v569 = vpack.c.b16 %v553, %v552
      %v570 = vpack.c.b16 %v555, %v554
      %v571 = vpack.c.b16 %v557, %v556
      %v572 = vpack.c.b16 %v559, %v558
      %v573 = vpack.c.b16 %v561, %v560
      %v574 = vpack.c.b16 %v563, %v562
      %v575 = vpack.c.b16 %v565, %v564
      %v576 = vpack.c.b16 %v567, %v566
      %v586 = vsel %vm494, %v493, 0
      %588 = vmatpush.bf16.msra.mxu0 %v575
      %589 = vmatpush.bf16.msra.mxu0 %v574
      %590 = vmatpush.bf16.msra.mxu0 %v573
      %591 = vmatpush.bf16.msra.mxu0 %v572
      %592 = vmatpush.bf16.msra.mxu0 %v571
      %593 = vmatpush.bf16.msra.mxu0 %v570
      %594 = vmatpush.bf16.msra.mxu0 %v569
      %595 = vmatpush.bf16.msra.mxu0 %v568
      %596 = vmatmul.bf16.gmra.mxu0 %v508
      %v597 = vpop.f32.mrf.mxu0
      %v598 = vadd.f32 %v530, %v597
      %v599 = vpop.f32.mrf.mxu0
      %v600 = vadd.f32 %v530, %v599
      %601 = vdwg.mxu0
      %602 = vmatpush.bf16.msra.mxu0 0
      %603 = vmatpush.bf16.msra.mxu0 0
      %604 = vmatpush.bf16.msra.mxu0 0
      %605 = vmatpush.bf16.msra.mxu0 0
      %606 = vmatpush.bf16.msra.mxu0 0
      %607 = vmatpush.bf16.msra.mxu0 0
      %608 = vmatpush.bf16.msra.mxu0 0
      %609 = vmatpush.bf16.msra.mxu0 %v576
      %610 = vmatmul.bf16.gmra.mxu0 %v586
      %v611 = vpop.f32.mrf.mxu0
      %v612 = vadd.f32 %v598, %v611
      %v613 = vpop.f32.mrf.mxu0
      %v614 = vadd.f32 %v600, %v613
      %615 = vdwg.mxu0
      %v616 = vmax.f32 %v612, 0.0
      %v617 = vmax.f32 %v614, 0.0
      %618 = vrot.lane.b32.xlu0 %v453, 96
      %v619 = vpop.permute.xlu0 %618
      %620 = vrot.lane.b32.xlu0 %v474, 16
      %v621 = vpop.permute.xlu0 %620
      %622 = vrot.lane.b32.xlu0 %v491, 64
      %v623 = vpop.permute.xlu0 %622
      %v625 = vsel %vm495, %v619, %v619
      %v627 = vsel %vm497, %v625, %v621
      %v628 = vsel %vm500, %v627, %v621
      %v629 = vsel %vm502, %v628, %v621
      %v631 = vsel %vm504, %v629, %v623
      %v632 = vsel %vm507, %v631, %v623
      %v634 = vsel %vm494, %v623, 0
      %636 = vmatpush.bf16.msra.mxu0 %v575
      %637 = vmatpush.bf16.msra.mxu0 %v574
      %638 = vmatpush.bf16.msra.mxu0 %v573
      %639 = vmatpush.bf16.msra.mxu0 %v572
      %640 = vmatpush.bf16.msra.mxu0 %v571
      %641 = vmatpush.bf16.msra.mxu0 %v570
      %642 = vmatpush.bf16.msra.mxu0 %v569
      %643 = vmatpush.bf16.msra.mxu0 %v568
      %644 = vmatmul.bf16.gmra.mxu0 %v632
      %v645 = vpop.f32.mrf.mxu0
      %v646 = vadd.f32 %v530, %v645
      %v647 = vpop.f32.mrf.mxu0
      %v648 = vadd.f32 %v530, %v647
      %649 = vdwg.mxu0
      %650 = vmatpush.bf16.msra.mxu0 0
      %651 = vmatpush.bf16.msra.mxu0 0
      %652 = vmatpush.bf16.msra.mxu0 0
      %653 = vmatpush.bf16.msra.mxu0 0
      %654 = vmatpush.bf16.msra.mxu0 0
      %655 = vmatpush.bf16.msra.mxu0 0
      %656 = vmatpush.bf16.msra.mxu0 0
      %657 = vmatpush.bf16.msra.mxu0 %v576
      %658 = vmatmul.bf16.gmra.mxu0 %v634
      %v659 = vpop.f32.mrf.mxu0
      %v660 = vadd.f32 %v646, %v659
      %v661 = vpop.f32.mrf.mxu0
      %v662 = vadd.f32 %v648, %v661
      %663 = vdwg.mxu0
      %v664 = vmax.f32 %v660, 0.0
      %v665 = vmax.f32 %v662, 0.0
      %666 = vrot.lane.b32.xlu0 %v453, 64
      %v667 = vpop.permute.xlu0 %666
      %668 = vrot.lane.b32.xlu0 %v474, 112
      %v669 = vpop.permute.xlu0 %668
      %670 = vrot.lane.b32.xlu0 %v491, 32
      %v671 = vpop.permute.xlu0 %670
      %v673 = vsel %vm495, %v667, %v667
      %v675 = vsel %vm497, %v673, %v669
      %v676 = vsel %vm500, %v675, %v669
      %v677 = vsel %vm502, %v676, %v669
      %v679 = vsel %vm504, %v677, %v671
      %v680 = vsel %vm507, %v679, %v671
      %v682 = vsel %vm494, %v671, 0
      %684 = vmatpush.bf16.msra.mxu0 %v575
      %685 = vmatpush.bf16.msra.mxu0 %v574
      %686 = vmatpush.bf16.msra.mxu0 %v573
      %687 = vmatpush.bf16.msra.mxu0 %v572
      %688 = vmatpush.bf16.msra.mxu0 %v571
      %689 = vmatpush.bf16.msra.mxu0 %v570
      %690 = vmatpush.bf16.msra.mxu0 %v569
      %691 = vmatpush.bf16.msra.mxu0 %v568
      %692 = vmatmul.bf16.gmra.mxu0 %v680
      %v693 = vpop.f32.mrf.mxu0
      %v694 = vadd.f32 %v530, %v693
      %v695 = vpop.f32.mrf.mxu0
      %v696 = vadd.f32 %v530, %v695
      %697 = vdwg.mxu0
      %698 = vmatpush.bf16.msra.mxu0 0
      %699 = vmatpush.bf16.msra.mxu0 0
      %700 = vmatpush.bf16.msra.mxu0 0
      %701 = vmatpush.bf16.msra.mxu0 0
      %702 = vmatpush.bf16.msra.mxu0 0
      %703 = vmatpush.bf16.msra.mxu0 0
      %704 = vmatpush.bf16.msra.mxu0 0
      %705 = vmatpush.bf16.msra.mxu0 %v576
      %706 = vmatmul.bf16.gmra.mxu0 %v682
      %v707 = vpop.f32.mrf.mxu0
      %v708 = vadd.f32 %v694, %v707
      %v709 = vpop.f32.mrf.mxu0
      %v710 = vadd.f32 %v696, %v709
      %711 = vdwg.mxu0
      %v712 = vmax.f32 %v708, 0.0
      %v713 = vmax.f32 %v710, 0.0
      %v714 = vld [vmem:[#allocation2 + $0x4] sm:$0xf]
      %v715 = vld [vmem:[#allocation2 + $0xc] sm:$0xf]
      %v716 = vld [vmem:[#allocation2 + $0x14] sm:$0xf]
      %v717 = vld [vmem:[#allocation2 + $0x1c] sm:$0xf]
      %v718 = vld [vmem:[#allocation2 + $0x24] sm:$0x1]
      %v719 = vld [vmem:[#allocation2 + $0x14] sm:$0x1]
      %720 = vrot.lane.b32.xlu0 %v453, 32
      %v721 = vpop.permute.xlu0 %720
      %v724 = vunpack.c.l.b16 %v714
      %v725 = vunpack.c.l.b16 %v715
      %v726 = vpack.c.b16 %v725, %v724
      %727 = vrot.lane.b32.xlu0 %v726, 32
      %v728 = vpop.permute.xlu0 %727
      %729 = vrot.lane.b32.xlu0 %v474, 80
      %v730 = vpop.permute.xlu0 %729
      %v734 = vunpack.c.l.b16 %v716
      %v735 = vunpack.c.l.b16 %v717
      %v736 = vunpack.c.l.b16 %v718
      %v737 = vpack.c.b16 %v735, %v734
      %v738 = vpack.c.b16 %v736, %v736
      %v740 = vshrl.u32 %v737, 16
      %v742 = vshll.u32 %v737, 16
      %v744 = vrot.slane %v742, 1
      %v745 = vor.u32 %v740, %v744
      %v747 = vshll.u32 %v738, 16
      %v749 = vrot.slane %v747, 1
      %v750 = vsel %vm462, %v745, %v749
      %751 = vrot.lane.b32.xlu0 %v750, 80
      %v752 = vpop.permute.xlu0 %751
      %v754 = vunpack.c.l.b16 %v719
      %v755 = vpack.c.b16 %v754, %v754
      %v757 = vshrl.u32 %v726, 16
      %v759 = vshll.u32 %v726, 16
      %v761 = vrot.slane %v759, 1
      %v762 = vor.u32 %v757, %v761
      %v764 = vshll.u32 %v755, 16
      %v766 = vrot.slane %v764, 1
      %v767 = vsel %vm462, %v762, %v766
      %v770 = vsel %vm495, %v721, %v728
      %v772 = vsel %vm497, %v770, %v730
      %v773 = vsel %vm500, %v772, %v730
      %v775 = vsel %vm502, %v773, %v752
      %v777 = vsel %vm504, %v775, %v491
      %v778 = vsel %vm507, %v777, %v491
      %v781 = vsel %vm494, %v767, 0
      %783 = vmatpush.bf16.msra.mxu0 %v575
      %784 = vmatpush.bf16.msra.mxu0 %v574
      %785 = vmatpush.bf16.msra.mxu0 %v573
      %786 = vmatpush.bf16.msra.mxu0 %v572
      %787 = vmatpush.bf16.msra.mxu0 %v571
      %788 = vmatpush.bf16.msra.mxu0 %v570
      %789 = vmatpush.bf16.msra.mxu0 %v569
      %790 = vmatpush.bf16.msra.mxu0 %v568
      %791 = vmatmul.bf16.gmra.mxu0 %v778
      %v792 = vpop.f32.mrf.mxu0
      %v793 = vadd.f32 %v530, %v792
      %v794 = vpop.f32.mrf.mxu0
      %v795 = vadd.f32 %v530, %v794
      %796 = vdwg.mxu0
      %797 = vmatpush.bf16.msra.mxu0 0
      %798 = vmatpush.bf16.msra.mxu0 0
      %799 = vmatpush.bf16.msra.mxu0 0
      %800 = vmatpush.bf16.msra.mxu0 0
      %801 = vmatpush.bf16.msra.mxu0 0
      %802 = vmatpush.bf16.msra.mxu0 0
      %803 = vmatpush.bf16.msra.mxu0 0
      %804 = vmatpush.bf16.msra.mxu0 %v576
      %805 = vmatmul.bf16.gmra.mxu0 %v781
      %v806 = vpop.f32.mrf.mxu0
      %v807 = vadd.f32 %v793, %v806
      %v808 = vpop.f32.mrf.mxu0
      %v809 = vadd.f32 %v795, %v808
      %810 = vdwg.mxu0
      %v811 = vmax.f32 %v807, 0.0
      %v812 = vmax.f32 %v809, 0.0
      %815 = vrot.lane.b32.xlu0 %v664, 16
      %v816 = vpop.permute.xlu0 %815
      %817 = vrot.lane.b32.xlu0 %v665, 16
      %v818 = vpop.permute.xlu0 %817
      %823 = vrot.lane.b32.xlu0 %v712, 32
      %v824 = vpop.permute.xlu0 %823
      %825 = vrot.lane.b32.xlu0 %v713, 32
      %v826 = vpop.permute.xlu0 %825
      %831 = vrot.lane.b32.xlu0 %v811, 48
      %v832 = vpop.permute.xlu0 %831
      %833 = vrot.lane.b32.xlu0 %v812, 48
      %v834 = vpop.permute.xlu0 %833
      %v837 = vsel %vm494, %v616, %v816
      %v838 = vsel %vm494, %v617, %v818
      %v839 = vsel %vm495, %v837, %v824
      %v840 = vsel %vm495, %v838, %v826
      %v841 = vsel %vm497, %v839, %v832
      %v842 = vsel %vm497, %v840, %v834
      %v843 = vpack.c.bf16 %v842, %v841
      %v844 = vld [vmem:[%s4] sm:$0xf]
      %v845 = vld [vmem:[%s4 + $0x4] sm:$0xf]
      %v846 = vld [vmem:[%s4 + $0x8] sm:$0xf]
      %v847 = vld [vmem:[%s4 + $0xc] sm:$0xf]
      %v848 = vld [vmem:[%s4 + $0x10] sm:$0xf]
      %v849 = vld [vmem:[%s4 + $0x14] sm:$0xf]
      %v850 = vld [vmem:[%s4 + $0x18] sm:$0xf]
      %v851 = vld [vmem:[%s4 + $0x1c] sm:$0xf]
      %v852 = vld [vmem:[%s5] sm:$0x1]
      %v854 = vperm.slane %v852, 0
      %v864 = vunpack.c.l.b16 %v844
      %v865 = vunpack.c.l.b16 %v845
      %v866 = vunpack.c.l.b16 %v846
      %v867 = vunpack.c.l.b16 %v847
      %v868 = vunpack.c.l.b16 %v848
      %v869 = vunpack.c.l.b16 %v849
      %v870 = vunpack.c.l.b16 %v850
      %v871 = vunpack.c.l.b16 %v851
      %v872 = vpack.c.b16 %v865, %v864
      %v873 = vpack.c.b16 %v867, %v866
      %v874 = vpack.c.b16 %v869, %v868
      %v875 = vpack.c.b16 %v871, %v870
      %v881 = vsel %vm500, %v843, 0
      %883 = vmatpush.bf16.msra.mxu0 0
      %884 = vmatpush.bf16.msra.mxu0 0
      %885 = vmatpush.bf16.msra.mxu0 0
      %886 = vmatpush.bf16.msra.mxu0 0
      %887 = vmatpush.bf16.msra.mxu0 %v875
      %888 = vmatpush.bf16.msra.mxu0 %v874
      %889 = vmatpush.bf16.msra.mxu0 %v873
      %890 = vmatpush.bf16.msra.mxu0 %v872
      %891 = vmatmul.bf16.gmra.mxu0 %v881
      %v892 = vpop.f32.mrf.mxu0
      %v893 = vadd.f32 %v854, %v892
      %v894 = vpop.f32.mrf.mxu0
      %v895 = vadd.f32 %v854, %v894
      %896 = vdwg.mxu0
      %897 = vst [vmem:[%s251] sm:$0xff] %v893
      %898 = vst [vmem:[%s251 + $0x8] sm:$0xff] %v895
      %s899 = smul.u32 2, %s17
      %p900 = scmp.lt.s32.totalorder %s899, 3
      %s901 = scalar_select %p900, %s899, 3
      %s902 = smul.addr %s901, 8
      %s903 = scalar_lea.vmem %s6, %s902
      // Predicated region
      $region45: #{striding_subsampling_forward.1} parent=43 // pred_check
        %p904 = pneg %p166
      $region46: #{striding_subsampling_forward.1} parent=43 // pred_check_branch
        %906 = sbr.rel (%p904) target = $region48
      $region47: #{striding_subsampling_forward.1} parent=43 // pred_region
        %s907 = smul.u32 2, %s17
      $region48: #{striding_subsampling_forward.1} parent=43 // pred_fallthru
        _
    $region44: #{striding_subsampling_forward.1} parent=5 // pred_fallthru
      _
    %p908 = scmp.le.s32.totalorder 2, %s12
    // Predicated region
    $region49: #{striding_subsampling_forward.1} parent=5 // pred_check
      %p909 = pneg %p908
    $region50: #{striding_subsampling_forward.1} parent=5 // pred_check_branch
      %911 = sbr.rel (%p909) target = $region52
    $region51: #{striding_subsampling_forward.1} parent=5 // pred_region
      %s912 = ssub.s32 %s12, 2
      // Predicated region
      $region53: #{striding_subsampling_forward.1} parent=51 // pred_check
        %p913 = pneg %p172
      $region54: #{striding_subsampling_forward.1} parent=51 // pred_check_branch
        %915 = sbr.rel (%p913) target = $region56
      $region55: #{striding_subsampling_forward.1} parent=51 // pred_region
        %s916 = smul.u32 2, %s18
        %p917 = scmp.lt.s32.totalorder %s916, 3
        %s918 = scalar_select %p917, %s916, 3
        %s919 = smul.addr %s918, 8
        %s920 = scalar_lea.vmem %s6, %s919
      $region56: #{striding_subsampling_forward.1} parent=51 // pred_fallthru
        _
    $region52: #{striding_subsampling_forward.1} parent=5 // pred_fallthru
      _
  $region6: #{striding_subsampling_forward.1} parent=0 // loop_footer
    %s16 = sadd.s32 1, %s12
  $region7: #{striding_subsampling_forward.1} parent=0 // loop_footer_branch
    %11 = sbr.rel target = $region3
  $region8: #{striding_subsampling_forward.1} parent=0 // loop_exit
    _

</llo_original>
